<compile_context>
chip_gen: v7x
topology: tpu7x:2x2x1
jax: 0.10.0
libtpu: 0.0.40
codegen_flags: <defaults>
</compile_context>

<pallas_src>
import jax
import jax.numpy as jnp
from jax.experimental import pallas as pl
from jax.experimental.pallas import tpu as pltpu


# ----------------------------------------------------------------------------
# Pallas kernel: one fused decoder step (GRU cell + output projection)
# ----------------------------------------------------------------------------
def _decoder_step_kernel(emb_ref, att_ref, h_ref,
                         wie_ref, wia_ref, whh_ref, bi_ref, bh_ref,
                         wo_ref, bo_ref,
                         logits_ref, h_out_ref):
    H = h_ref.shape[-1]

    h = h_ref[...]                                  # (B, H)  f32 recurrent state
    emb = emb_ref[...].astype(jnp.bfloat16)         # (B, E)
    att = att_ref[...].astype(jnp.bfloat16)         # (B, 2H)
    h_b = h.astype(jnp.bfloat16)

    # Fused input gates: gx = [emb | att] @ W_i + b_i, columns = [r | z | n]
    gx = (jnp.dot(emb, wie_ref[...], preferred_element_type=jnp.float32)
          + jnp.dot(att, wia_ref[...], preferred_element_type=jnp.float32)
          + bi_ref[...])                            # (B, 3H) f32
    gh = (jnp.dot(h_b, whh_ref[...], preferred_element_type=jnp.float32)
          + bh_ref[...])                            # (B, 3H) f32

    r = jax.nn.sigmoid(gx[:, 0 * H:1 * H] + gh[:, 0 * H:1 * H])
    z = jax.nn.sigmoid(gx[:, 1 * H:2 * H] + gh[:, 1 * H:2 * H])
    n = jnp.tanh(gx[:, 2 * H:3 * H] + r * gh[:, 2 * H:3 * H])
    h_new = (1.0 - z) * n + z * h                   # (B, H) f32

    h_out_ref[...] = h_new.astype(h_out_ref.dtype)

    # Fused output projection (nn.Linear) on the fresh hidden state.
    logits = (jnp.dot(h_new.astype(jnp.bfloat16), wo_ref[...],
                      preferred_element_type=jnp.float32)
              + bo_ref[...])                        # (B, V) f32
    logits_ref[...] = logits.astype(logits_ref.dtype)


# ----------------------------------------------------------------------------
# Wrapper
# ----------------------------------------------------------------------------
def decoder_forward(kparams, input_ids, att, h):
    """input_ids: (1, B) int32; att: (B, 2H) f32; h: (1, B, H) f32.
    Returns (logits (B, V), h_new (1, B, H)) matching the PyTorch forward."""
    # embedding gather kept as plain-JAX glue (table may not fit VMEM)
    emb = jnp.take(kparams["embedding"], input_ids[0], axis=0)   # (B, E)
    B = emb.shape[0]
    H = h.shape[-1]
    V = kparams["bo"].shape[-1]

    vmem = pl.BlockSpec(memory_space=pltpu.MemorySpace.VMEM)
    logits, h_new = pl.pallas_call(
        _decoder_step_kernel,
        out_shape=(jax.ShapeDtypeStruct((B, V), jnp.float32),
                   jax.ShapeDtypeStruct((B, H), jnp.float32)),
        in_specs=[vmem] * 10,
        out_specs=(vmem, vmem),
    )(emb, att, h[0],
      kparams["wie"], kparams["wia"], kparams["whh"],
      kparams["bi"], kparams["bh"], kparams["wo"], kparams["bo"])
    return logits, h_new[None]


# ----------------------------------------------------------------------------
# Parameters: init in PyTorch layout, convert ONCE to the fused kernel layout
# ----------------------------------------------------------------------------
def init_decoder_params_torch_layout(key, hidden_size, vocab_size,
                                     embedding_size):
    D = 2 * hidden_size + embedding_size
    key, k_emb = jax.random.split(key)
    emb = jax.random.normal(k_emb, (vocab_size, embedding_size),
                            jnp.float32) * 0.1
    s = 1.0 / jnp.sqrt(hidden_size)
    key, k1, k2, k3, k4, k5, k6 = jax.random.split(key, 7)
    w_ih = jax.random.uniform(k1, (3 * hidden_size, D), jnp.float32, -s, s)
    w_hh = jax.random.uniform(k2, (3 * hidden_size, hidden_size),
                              jnp.float32, -s, s)
    b_ih = jax.random.uniform(k3, (3 * hidden_size,), jnp.float32, -s, s)
    b_hh = jax.random.uniform(k4, (3 * hidden_size,), jnp.float32, -s, s)
    w_out = jax.random.uniform(k5, (vocab_size, hidden_size),
                               jnp.float32, -s, s)
    b_out = jax.random.uniform(k6, (vocab_size,), jnp.float32, -s, s)
    return dict(embedding=emb, w_ih=w_ih, w_hh=w_hh, b_ih=b_ih, b_hh=b_hh,
                w_out=w_out, b_out=b_out)


def prep_kernel_params(pt, hidden_size, embedding_size):
    """One-time conversion: PyTorch (3H, D) gate-stacked weights ->
    pre-transposed, gate-fused, bf16 kernel layout."""
    E = embedding_size
    wi = pt["w_ih"].T                               # (D, 3H), D = E + 2H
    return dict(
        embedding=pt["embedding"],                  # (V, E) f32
        wie=wi[:E].astype(jnp.bfloat16),            # (E, 3H)  embedding slab
        wia=wi[E:].astype(jnp.bfloat16),            # (2H, 3H) attention slab
        whh=pt["w_hh"].T.astype(jnp.bfloat16),      # (H, 3H)
        bi=pt["b_ih"].reshape(1, -1),               # (1, 3H) f32
        bh=pt["b_hh"].reshape(1, -1),               # (1, 3H) f32
        wo=pt["w_out"].T.astype(jnp.bfloat16),      # (H, V)
        bo=pt["b_out"].reshape(1, -1),              # (1, V) f32
    )


# ----------------------------------------------------------------------------
# Pure-JAX reference (same math, bf16-rounded operands to match the kernel)
# ----------------------------------------------------------------------------
def decoder_forward_ref(pt, hidden_size, input_ids, att, h):
    H = hidden_size

    def q(a):  # emulate the kernel's bf16 operand rounding
        return a.astype(jnp.bfloat16).astype(jnp.float32)

    emb = jnp.take(pt["embedding"], input_ids[0], axis=0)        # (B, E)
    x = jnp.concatenate([emb, att], axis=-1)                     # (B, D)
    h0 = h[0]

    gx = q(x) @ q(pt["w_ih"]).T + pt["b_ih"]
    gh = q(h0) @ q(pt["w_hh"]).T + pt["b_hh"]
    r = jax.nn.sigmoid(gx[:, :H] + gh[:, :H])
    z = jax.nn.sigmoid(gx[:, H:2 * H] + gh[:, H:2 * H])
    n = jnp.tanh(gx[:, 2 * H:] + r * gh[:, 2 * H:])
    h_new = (1.0 - z) * n + z * h0
    logits = q(h_new) @ q(pt["w_out"]).T + pt["b_out"]
    return logits, h_new[None]


# ----------------------------------------------------------------------------
if __name__ == "__main__":
    hidden_size = 16
    vocab_size = 32
    embedding_size = 16
    batch_size = 2

    key = jax.random.PRNGKey(0)
    key, k_params, k_ids, k_att, k_h = jax.random.split(key, 5)

    pt_params = init_decoder_params_torch_layout(
        k_params, hidden_size, vocab_size, embedding_size)
    kparams = prep_kernel_params(pt_params, hidden_size, embedding_size)

    input_ids = jax.random.randint(k_ids, (1, batch_size), 0, vocab_size,
                                   dtype=jnp.int32)
    att = jax.random.normal(k_att, (batch_size, 2 * hidden_size), jnp.float32)
    h0 = jax.random.normal(k_h, (1, batch_size, hidden_size), jnp.float32)

    fwd = jax.jit(decoder_forward)
    logits, h_new = fwd(kparams, input_ids, att, h0)
    logits = jax.block_until_ready(logits)
    h_new = jax.block_until_ready(h_new)

    assert logits.shape == (batch_size, vocab_size)
    assert h_new.shape == (1, batch_size, hidden_size)

    # correctness check against a pure-JAX reference
    logits_ref, h_ref = decoder_forward_ref(pt_params, hidden_size,
                                            input_ids, att, h0)
    assert jnp.allclose(logits, logits_ref, atol=1e-2, rtol=1e-2), \
        float(jnp.max(jnp.abs(logits - logits_ref)))
    assert jnp.allclose(h_new, h_ref, atol=1e-2, rtol=1e-2), \
        float(jnp.max(jnp.abs(h_new - h_ref)))

    print("KERNEL_OK")
</pallas_src>

<mosaic_0001>
module attributes {stable_mosaic.version = 11 : i64} {
  func.func @_decoder_step_kernel(%arg0: memref<2x16xf32, #tpu.memory_space<vmem>>, %arg1: memref<2x32xf32, #tpu.memory_space<vmem>>, %arg2: memref<2x16xf32, #tpu.memory_space<vmem>>, %arg3: memref<16x48xbf16, #tpu.memory_space<vmem>>, %arg4: memref<32x48xbf16, #tpu.memory_space<vmem>>, %arg5: memref<16x48xbf16, #tpu.memory_space<vmem>>, %arg6: memref<1x48xf32, #tpu.memory_space<vmem>>, %arg7: memref<1x48xf32, #tpu.memory_space<vmem>>, %arg8: memref<16x32xbf16, #tpu.memory_space<vmem>>, %arg9: memref<1x32xf32, #tpu.memory_space<vmem>>, %arg10: memref<2x32xf32, #tpu.memory_space<vmem>>, %arg11: memref<2x16xf32, #tpu.memory_space<vmem>>) attributes {dimension_semantics = [], scalar_prefetch = 0 : i64, scratch_operands = 0 : i64, tpu.core_type = #tpu.core_type<tc>} {
    %c0 = arith.constant 0 : index
    %c0_0 = arith.constant 0 : index
    %0 = vector.load %arg2[%c0, %c0_0] : memref<2x16xf32, #tpu.memory_space<vmem>>, vector<2x16xf32>
    %c0_1 = arith.constant 0 : index
    %c0_2 = arith.constant 0 : index
    %1 = vector.load %arg0[%c0_1, %c0_2] : memref<2x16xf32, #tpu.memory_space<vmem>>, vector<2x16xf32>
    %2 = arith.truncf %1 : vector<2x16xf32> to vector<2x16xbf16>
    %c0_3 = arith.constant 0 : index
    %c0_4 = arith.constant 0 : index
    %3 = vector.load %arg1[%c0_3, %c0_4] : memref<2x32xf32, #tpu.memory_space<vmem>>, vector<2x32xf32>
    %4 = arith.truncf %3 : vector<2x32xf32> to vector<2x32xbf16>
    %5 = arith.truncf %0 : vector<2x16xf32> to vector<2x16xbf16>
    %c0_5 = arith.constant 0 : index
    %c0_6 = arith.constant 0 : index
    %6 = vector.load %arg3[%c0_5, %c0_6] : memref<16x48xbf16, #tpu.memory_space<vmem>>, vector<16x48xbf16>
    %cst = arith.constant dense<0.000000e+00> : vector<2x48xf32>
    %7 = tpu.matmul %2, %6, %cst {dimension_numbers = #tpu.dot_dimension_numbers<[1], [0], [0], [1], [0, 0, 1, 1], [], []>} : vector<2x16xbf16>, vector<16x48xbf16>, vector<2x48xf32> -> vector<2x48xf32>
    %c0_7 = arith.constant 0 : index
    %c0_8 = arith.constant 0 : index
    %8 = vector.load %arg4[%c0_7, %c0_8] : memref<32x48xbf16, #tpu.memory_space<vmem>>, vector<32x48xbf16>
    %cst_9 = arith.constant dense<0.000000e+00> : vector<2x48xf32>
    %9 = tpu.matmul %4, %8, %cst_9 {dimension_numbers = #tpu.dot_dimension_numbers<[1], [0], [0], [1], [0, 0, 1, 1], [], []>} : vector<2x32xbf16>, vector<32x48xbf16>, vector<2x48xf32> -> vector<2x48xf32>
    %10 = arith.addf %7, %9 : vector<2x48xf32>
    %c0_10 = arith.constant 0 : index
    %c0_11 = arith.constant 0 : index
    %11 = vector.load %arg6[%c0_10, %c0_11] : memref<1x48xf32, #tpu.memory_space<vmem>>, vector<1x48xf32>
    %12 = vector.broadcast %11 : vector<1x48xf32> to vector<2x48xf32>
    %13 = arith.addf %10, %12 : vector<2x48xf32>
    %c0_12 = arith.constant 0 : index
    %c0_13 = arith.constant 0 : index
    %14 = vector.load %arg5[%c0_12, %c0_13] : memref<16x48xbf16, #tpu.memory_space<vmem>>, vector<16x48xbf16>
    %cst_14 = arith.constant dense<0.000000e+00> : vector<2x48xf32>
    %15 = tpu.matmul %5, %14, %cst_14 {dimension_numbers = #tpu.dot_dimension_numbers<[1], [0], [0], [1], [0, 0, 1, 1], [], []>} : vector<2x16xbf16>, vector<16x48xbf16>, vector<2x48xf32> -> vector<2x48xf32>
    %c0_15 = arith.constant 0 : index
    %c0_16 = arith.constant 0 : index
    %16 = vector.load %arg7[%c0_15, %c0_16] : memref<1x48xf32, #tpu.memory_space<vmem>>, vector<1x48xf32>
    %17 = vector.broadcast %16 : vector<1x48xf32> to vector<2x48xf32>
    %18 = arith.addf %15, %17 : vector<2x48xf32>
    %19 = vector.extract_strided_slice %13 {offsets = [0, 0], sizes = [2, 16], strides = [1, 1]} : vector<2x48xf32> to vector<2x16xf32>
    %20 = vector.extract_strided_slice %18 {offsets = [0, 0], sizes = [2, 16], strides = [1, 1]} : vector<2x48xf32> to vector<2x16xf32>
    %21 = arith.addf %19, %20 : vector<2x16xf32>
    %22 = arith.negf %21 : vector<2x16xf32>
    %23 = math.exp %22 : vector<2x16xf32>
    %cst_17 = arith.constant 1.000000e+00 : f32
    %24 = vector.broadcast %cst_17 : f32 to vector<2x16xf32>
    %25 = arith.addf %24, %23 : vector<2x16xf32>
    %26 = arith.divf %24, %25 : vector<2x16xf32>
    %27 = vector.extract_strided_slice %13 {offsets = [0, 16], sizes = [2, 16], strides = [1, 1]} : vector<2x48xf32> to vector<2x16xf32>
    %28 = vector.extract_strided_slice %18 {offsets = [0, 16], sizes = [2, 16], strides = [1, 1]} : vector<2x48xf32> to vector<2x16xf32>
    %29 = arith.addf %27, %28 : vector<2x16xf32>
    %30 = arith.negf %29 : vector<2x16xf32>
    %31 = math.exp %30 : vector<2x16xf32>
    %cst_18 = arith.constant 1.000000e+00 : f32
    %32 = vector.broadcast %cst_18 : f32 to vector<2x16xf32>
    %33 = arith.addf %32, %31 : vector<2x16xf32>
    %34 = arith.divf %32, %33 : vector<2x16xf32>
    %35 = vector.extract_strided_slice %13 {offsets = [0, 32], sizes = [2, 16], strides = [1, 1]} : vector<2x48xf32> to vector<2x16xf32>
    %36 = vector.extract_strided_slice %18 {offsets = [0, 32], sizes = [2, 16], strides = [1, 1]} : vector<2x48xf32> to vector<2x16xf32>
    %37 = arith.mulf %26, %36 : vector<2x16xf32>
    %38 = arith.addf %35, %37 : vector<2x16xf32>
    %39 = math.tanh %38 : vector<2x16xf32>
    %cst_19 = arith.constant 1.000000e+00 : f32
    %40 = vector.broadcast %cst_19 : f32 to vector<2x16xf32>
    %41 = arith.subf %40, %34 : vector<2x16xf32>
    %42 = arith.mulf %41, %39 : vector<2x16xf32>
    %43 = arith.mulf %34, %0 : vector<2x16xf32>
    %44 = arith.addf %42, %43 : vector<2x16xf32>
    %c0_20 = arith.constant 0 : index
    %c0_21 = arith.constant 0 : index
    %45 = vector.load %arg11[%c0_20, %c0_21] : memref<2x16xf32, #tpu.memory_space<vmem>>, vector<2x16xf32>
    tpu.vector_store %arg11[%c0_20, %c0_21], %44 {strides = array<i32>} : memref<2x16xf32, #tpu.memory_space<vmem>>, vector<2x16xf32>,
    %46 = arith.truncf %44 : vector<2x16xf32> to vector<2x16xbf16>
    %c0_22 = arith.constant 0 : index
    %c0_23 = arith.constant 0 : index
    %47 = vector.load %arg8[%c0_22, %c0_23] : memref<16x32xbf16, #tpu.memory_space<vmem>>, vector<16x32xbf16>
    %cst_24 = arith.constant dense<0.000000e+00> : vector<2x32xf32>
    %48 = tpu.matmul %46, %47, %cst_24 {dimension_numbers = #tpu.dot_dimension_numbers<[1], [0], [0], [1], [0, 0, 1, 1], [], []>} : vector<2x16xbf16>, vector<16x32xbf16>, vector<2x32xf32> -> vector<2x32xf32>
    %c0_25 = arith.constant 0 : index
    %c0_26 = arith.constant 0 : index
    %49 = vector.load %arg9[%c0_25, %c0_26] : memref<1x32xf32, #tpu.memory_space<vmem>>, vector<1x32xf32>
    %50 = vector.broadcast %49 : vector<1x32xf32> to vector<2x32xf32>
    %51 = arith.addf %48, %50 : vector<2x32xf32>
    %c0_27 = arith.constant 0 : index
    %c0_28 = arith.constant 0 : index
    %52 = vector.load %arg10[%c0_27, %c0_28] : memref<2x32xf32, #tpu.memory_space<vmem>>, vector<2x32xf32>
    tpu.vector_store %arg10[%c0_27, %c0_28], %51 {strides = array<i32>} : memref<2x32xf32, #tpu.memory_space<vmem>>, vector<2x32xf32>,
    return
  }
}

</mosaic_0001>

<llo_original>
// kernel: decoder_forward.1
$region0: #{decoder_forward.1}
  #allocation0 [shape = 'u32[]', space=smem, size = 0x4, offset = 0x4, fixed_abs, tag = 'smem constant byte address 0x4 - core index']
  #allocation1 [shape = 'u32[144,128]{1,0:T(1,128)}', space=vmem, size = 0x12000, scoped, tag = 'internal scratch']
  %s0 = inlined_call_operand.vmem [shape: f32[2,16], index: 0, kind: input, shape index: {}]
  %s1 = inlined_call_operand.vmem [shape: f32[2,32], index: 1, kind: input, shape index: {}]
  %s2 = inlined_call_operand.vmem [shape: f32[2,16], index: 2, kind: input, shape index: {}]
  %s3 = inlined_call_operand.vmem [shape: bf16[16,48], index: 3, kind: input, shape index: {}]
  %s4 = inlined_call_operand.vmem [shape: bf16[32,48], index: 4, kind: input, shape index: {}]
  %s5 = inlined_call_operand.vmem [shape: bf16[16,48], index: 5, kind: input, shape index: {}]
  %s6 = inlined_call_operand.vmem [shape: f32[1,48], index: 6, kind: input, shape index: {}]
  %s7 = inlined_call_operand.vmem [shape: f32[1,48], index: 7, kind: input, shape index: {}]
  %s8 = inlined_call_operand.vmem [shape: bf16[16,32], index: 8, kind: input, shape index: {}]
  %s9 = inlined_call_operand.vmem [shape: f32[1,32], index: 9, kind: input, shape index: {}]
  %s10 = inlined_call_operand.hbm [shape: f32[2,32], index: 10, kind: output, shape index: {0}]
  %s11 = inlined_call_operand.hbm [shape: f32[2,16], index: 11, kind: output, shape index: {1}]
  %12 = xla_tuple %s10, %s11
  %s13 = sld [smem:[#allocation0]]
  $region58: #{decoder_forward.1} parent=0
    _
  %s15 = ssub.s32 1, %s13
  %s16 = scalar_select 0, %s15, %s13
  $region1: #{decoder_forward.1} parent=0
    #allocation2 [shape = 'u8[1024]{0}', space=vmem, size = 0x400, scoped, tag = 'output window, operand 0, single buffered']
    #allocation3 [shape = 's32[1]{0}', space=sflag, size = 0x4, scoped, tag = 'scoped memory for decoder_forward.1']
    #allocation4 [shape = 'u8[1024]{0}', space=vmem, size = 0x400, scoped, tag = 'output window, operand 1, single buffered']
    #allocation5 [shape = 's32[1]{0}', space=sflag, size = 0x4, scoped, tag = 'scoped memory for decoder_forward.1']
    %17 = vsyncpa [#allocation3], 0
    %18 = vsyncpa [#allocation5], 0
    // Predicated region
    $region2: #{decoder_forward.1} parent=1 // pred_check
      _
    $region3: #{decoder_forward.1} parent=1 // pred_check_branch
      %20 = sbr.rel (0) target = $region5
    $region4: #{decoder_forward.1} parent=1 // pred_region
      _
    $region5: #{decoder_forward.1} parent=1 // pred_fallthru
      _
    // Predicated region
    $region6: #{decoder_forward.1} parent=1 // pred_check
      _
    $region7: #{decoder_forward.1} parent=1 // pred_check_branch
      %22 = sbr.rel (0) target = $region9
    $region8: #{decoder_forward.1} parent=1 // pred_region
      _
    $region9: #{decoder_forward.1} parent=1 // pred_fallthru
      _
    // Predicated region
    $region10: #{decoder_forward.1} parent=1 // pred_check
      _
    $region11: #{decoder_forward.1} parent=1 // pred_check_branch
      %24 = sbr.rel (0) target = $region13
    $region12: #{decoder_forward.1} parent=1 // pred_region
      _
    $region13: #{decoder_forward.1} parent=1 // pred_fallthru
      _
    // Predicated region
    $region14: #{decoder_forward.1} parent=1 // pred_check
      _
    $region15: #{decoder_forward.1} parent=1 // pred_check_branch
      %26 = sbr.rel (0) target = $region17
    $region16: #{decoder_forward.1} parent=1 // pred_region
      _
    $region17: #{decoder_forward.1} parent=1 // pred_fallthru
      _
    // Predicated region
    $region18: #{decoder_forward.1} parent=1 // pred_check
      _
    $region19: #{decoder_forward.1} parent=1 // pred_check_branch
      %28 = sbr.rel (0) target = $region21
    $region20: #{decoder_forward.1} parent=1 // pred_region
      _
    $region21: #{decoder_forward.1} parent=1 // pred_fallthru
      _
    // Predicated region
    $region22: #{decoder_forward.1} parent=1 // pred_check
      _
    $region23: #{decoder_forward.1} parent=1 // pred_check_branch
      %30 = sbr.rel (0) target = $region25
    $region24: #{decoder_forward.1} parent=1 // pred_region
      _
    $region25: #{decoder_forward.1} parent=1 // pred_fallthru
      _
    // Predicated region
    $region26: #{decoder_forward.1} parent=1 // pred_check
      _
    $region27: #{decoder_forward.1} parent=1 // pred_check_branch
      %32 = sbr.rel (0) target = $region29
    $region28: #{decoder_forward.1} parent=1 // pred_region
      _
    $region29: #{decoder_forward.1} parent=1 // pred_fallthru
      _
    // Predicated region
    $region30: #{decoder_forward.1} parent=1 // pred_check
      _
    $region31: #{decoder_forward.1} parent=1 // pred_check_branch
      %34 = sbr.rel (0) target = $region33
    $region32: #{decoder_forward.1} parent=1 // pred_region
      _
    $region33: #{decoder_forward.1} parent=1 // pred_fallthru
      _
    // Predicated region
    $region34: #{decoder_forward.1} parent=1 // pred_check
      _
    $region35: #{decoder_forward.1} parent=1 // pred_check_branch
      %36 = sbr.rel (0) target = $region37
    $region36: #{decoder_forward.1} parent=1 // pred_region
      _
    $region37: #{decoder_forward.1} parent=1 // pred_fallthru
      _
    // Predicated region
    $region38: #{decoder_forward.1} parent=1 // pred_check
      _
    $region39: #{decoder_forward.1} parent=1 // pred_check_branch
      %38 = sbr.rel (0) target = $region41
    $region40: #{decoder_forward.1} parent=1 // pred_region
      _
    $region41: #{decoder_forward.1} parent=1 // pred_fallthru
      _
    %v40 = vld [vmem:[%s2] sm:$0x3]
    %v41 = vld [vmem:[%s0] sm:$0x3]
    %v42 = vpack.c.bf16 %v41, %v41
    %v43 = vld [vmem:[%s1] sm:$0x3]
    %v44 = vpack.c.bf16 %v43, %v43
    %v45 = vpack.c.bf16 %v40, %v40
    %v46 = vld [vmem:[%s3] sm:$0xf]
    %v47 = vld [vmem:[%s3 + $0x4] sm:$0xf]
    %v48 = vld [vmem:[%s4] sm:$0xf]
    %v49 = vld [vmem:[%s4 + $0x4] sm:$0xf]
    %v50 = vld [vmem:[%s4 + $0x8] sm:$0xf]
    %v51 = vld [vmem:[%s4 + $0xc] sm:$0xf]
    %v56 = vunpack.c.l.b16 %v48
    %v57 = vunpack.c.l.b16 %v49
    %v58 = vunpack.c.l.b16 %v50
    %v59 = vunpack.c.l.b16 %v51
    %v60 = vpack.c.b16 %v57, %v56
    %v61 = vpack.c.b16 %v59, %v58
    %vm64 = vcmask 261120
    %v66 = vsel %vm64, %v44, 0
    %68 = vmatprep.subr.bf16.mxu0 0
    %69 = vmatpush1.bf16.msra.mxu0 %v60
    %70 = vmatprep.subr.bf16.mxu0 0
    %71 = vmatpush1.bf16.msra.mxu0 %v61
    %72 = vmatprep.subr.bf16.mxu0 0
    %73 = vmatpush1.bf16.msra.mxu0 0
    %74 = vmatprep.subr.bf16.mxu0 0
    %75 = vmatpush1.bf16.msra.mxu0 0
    %76 = vmatprep.subr.bf16.mxu0 0
    %77 = vmatpush1.bf16.msra.mxu0 0
    %78 = vmatprep.subr.bf16.mxu0 0
    %79 = vmatpush1.bf16.msra.mxu0 0
    %80 = vmatprep.subr.bf16.mxu0 0
    %81 = vmatpush1.bf16.msra.mxu0 0
    %82 = vmatprep.subr.bf16.mxu0 0
    %83 = vmatpush1.bf16.msra.mxu0 0
    %84 = vmatprep.subr.bf16.mxu0 0
    %85 = vmatpush1.bf16.msra.mxu0 0
    %86 = vmatprep.subr.bf16.mxu0 0
    %87 = vmatpush1.bf16.msra.mxu0 0
    %88 = vmatprep.subr.bf16.mxu0 0
    %89 = vmatpush1.bf16.msra.mxu0 0
    %90 = vmatprep.subr.bf16.mxu0 0
    %91 = vmatpush1.bf16.msra.mxu0 0
    %92 = vmatprep.subr.bf16.mxu0 0
    %93 = vmatpush1.bf16.msra.mxu0 0
    %94 = vmatprep.subr.bf16.mxu0 0
    %95 = vmatpush1.bf16.msra.mxu0 0
    %96 = vmatprep.subr.bf16.mxu0 0
    %97 = vmatpush1.bf16.msra.mxu0 0
    %98 = vmatprep.subr.bf16.mxu0 0
    %99 = vmatpush1.bf16.msra.mxu0 0
    %100 = vmatprep.mubr.bf16.mxu0 0
    %101 = vmatmul.mubr.bf16.gmra.mrb[0].mxu0 %v66
    %v102 = vpop.f32.mrb[0].mxu0
    %v103 = vadd.f32 0.0, %v102
    %v104 = vpop.f32.mrb[0].mxu0
    %v105 = vpop.f32.mrb[0].mxu0
    %v106 = vpop.f32.mrb[0].mxu0
    %107 = vdwg.mxu0
    %v110 = vunpack.c.l.b16 %v46
    %v111 = vunpack.c.l.b16 %v47
    %v112 = vpack.c.b16 %v111, %v110
    %vm114 = vcmask 130048
    %v116 = vsel %vm114, %v42, 0
    %118 = vmatprep.subr.bf16.mxu0 0
    %119 = vmatpush1.bf16.msra.mxu0 %v112
    %120 = vmatprep.subr.bf16.mxu0 0
    %121 = vmatpush1.bf16.msra.mxu0 0
    %122 = vmatprep.subr.bf16.mxu0 0
    %123 = vmatpush1.bf16.msra.mxu0 0
    %124 = vmatprep.subr.bf16.mxu0 0
    %125 = vmatpush1.bf16.msra.mxu0 0
    %126 = vmatprep.subr.bf16.mxu0 0
    %127 = vmatpush1.bf16.msra.mxu0 0
    %128 = vmatprep.subr.bf16.mxu0 0
    %129 = vmatpush1.bf16.msra.mxu0 0
    %130 = vmatprep.subr.bf16.mxu0 0
    %131 = vmatpush1.bf16.msra.mxu0 0
    %132 = vmatprep.subr.bf16.mxu0 0
    %133 = vmatpush1.bf16.msra.mxu0 0
    %134 = vmatprep.subr.bf16.mxu0 0
    %135 = vmatpush1.bf16.msra.mxu0 0
    %136 = vmatprep.subr.bf16.mxu0 0
    %137 = vmatpush1.bf16.msra.mxu0 0
    %138 = vmatprep.subr.bf16.mxu0 0
    %139 = vmatpush1.bf16.msra.mxu0 0
    %140 = vmatprep.subr.bf16.mxu0 0
    %141 = vmatpush1.bf16.msra.mxu0 0
    %142 = vmatprep.subr.bf16.mxu0 0
    %143 = vmatpush1.bf16.msra.mxu0 0
    %144 = vmatprep.subr.bf16.mxu0 0
    %145 = vmatpush1.bf16.msra.mxu0 0
    %146 = vmatprep.subr.bf16.mxu0 0
    %147 = vmatpush1.bf16.msra.mxu0 0
    %148 = vmatprep.subr.bf16.mxu0 0
    %149 = vmatpush1.bf16.msra.mxu0 0
    %150 = vmatprep.mubr.bf16.mxu0 0
    %151 = vmatmul.mubr.bf16.gmra.mrb[0].mxu0 %v116
    %v152 = vpop.f32.mrb[0].mxu0
    %v153 = vadd.f32 %v103, %v152
    %v154 = vpop.f32.mrb[0].mxu0
    %v155 = vpop.f32.mrb[0].mxu0
    %v156 = vpop.f32.mrb[0].mxu0
    %157 = vdwg.mxu0
    %v158 = vld [vmem:[%s6] sm:$0x1]
    %v160 = vlaneseq
    %v161 = vshrl.u32 %v160, 7
    %v162 = vsub.s32 0, %v161
    %v163 = vrot.slane %v158, %v162
    %v165 = vadd.f32 %v153, %v163
    %v166 = vld [vmem:[%s5] sm:$0xf]
    %v167 = vld [vmem:[%s5 + $0x4] sm:$0xf]
    %v168 = vld [vmem:[%s7] sm:$0x1]
    %v170 = vlaneseq
    %v171 = vshrl.u32 %v170, 7
    %v172 = vsub.s32 0, %v171
    %v173 = vrot.slane %v168, %v172
    %v177 = vunpack.c.l.b16 %v166
    %v178 = vunpack.c.l.b16 %v167
    %v179 = vpack.c.b16 %v178, %v177
    %v182 = vsel %vm114, %v45, 0
    %184 = vmatprep.subr.bf16.mxu0 0
    %185 = vmatpush1.bf16.msra.mxu0 %v179
    %186 = vmatprep.subr.bf16.mxu0 0
    %187 = vmatpush1.bf16.msra.mxu0 0
    %188 = vmatprep.subr.bf16.mxu0 0
    %189 = vmatpush1.bf16.msra.mxu0 0
    %190 = vmatprep.subr.bf16.mxu0 0
    %191 = vmatpush1.bf16.msra.mxu0 0
    %192 = vmatprep.subr.bf16.mxu0 0
    %193 = vmatpush1.bf16.msra.mxu0 0
    %194 = vmatprep.subr.bf16.mxu0 0
    %195 = vmatpush1.bf16.msra.mxu0 0
    %196 = vmatprep.subr.bf16.mxu0 0
    %197 = vmatpush1.bf16.msra.mxu0 0
    %198 = vmatprep.subr.bf16.mxu0 0
    %199 = vmatpush1.bf16.msra.mxu0 0
    %200 = vmatprep.subr.bf16.mxu0 0
    %201 = vmatpush1.bf16.msra.mxu0 0
    %202 = vmatprep.subr.bf16.mxu0 0
    %203 = vmatpush1.bf16.msra.mxu0 0
    %204 = vmatprep.subr.bf16.mxu0 0
    %205 = vmatpush1.bf16.msra.mxu0 0
    %206 = vmatprep.subr.bf16.mxu0 0
    %207 = vmatpush1.bf16.msra.mxu0 0
    %208 = vmatprep.subr.bf16.mxu0 0
    %209 = vmatpush1.bf16.msra.mxu0 0
    %210 = vmatprep.subr.bf16.mxu0 0
    %211 = vmatpush1.bf16.msra.mxu0 0
    %212 = vmatprep.subr.bf16.mxu0 0
    %213 = vmatpush1.bf16.msra.mxu0 0
    %214 = vmatprep.subr.bf16.mxu0 0
    %215 = vmatpush1.bf16.msra.mxu0 0
    %216 = vmatprep.mubr.bf16.mxu0 0
    %217 = vmatmul.mubr.bf16.gmra.mrb[0].mxu0 %v182
    %v218 = vpop.f32.mrb[0].mxu0
    %v219 = vadd.f32 %v173, %v218
    %v220 = vpop.f32.mrb[0].mxu0
    %v221 = vpop.f32.mrb[0].mxu0
    %v222 = vpop.f32.mrb[0].mxu0
    %223 = vdwg.mxu0
    %v224 = vadd.f32 %v165, %v219
    %v225 = vxor.u32 %v224, 2147483648
    %v226 = vmul.f32 %v225, 1.442695
    %v227 = vpow.pop %v226
    %v228 = vadd.f32 %v227, 1.0
    %v229 = vrcp.pop %v228
    %v230 = vmul.f32 1.0, %v229
    %232 = vrot.lane.b32.xlu0 %v219, 96
    %v233 = vpop.permute.xlu0 %232
    %v235 = vmul.f32 %v230, %v233
    %237 = vrot.lane.b32.xlu0 %v235, 32
    %v238 = vpop.permute.xlu0 %237
    %v240 = vadd.f32 %v165, %v238
    %v241 = vtanh.pop %v240
    %v242 = vsub.f32 1.0, %v230
    %244 = vrot.lane.b32.xlu0 %v241, 112
    %v245 = vpop.permute.xlu0 %244
    %v247 = vmul.f32 %v242, %v245
    %249 = vrot.lane.b32.xlu0 %v40, 16
    %v250 = vpop.permute.xlu0 %249
    %v252 = vmul.f32 %v230, %v250
    %v253 = vadd.f32 %v247, %v252
    %255 = vrot.lane.b32.xlu0 %v253, 112
    %v256 = vpop.permute.xlu0 %255
    %vm258 = vcmask 123904
    %259 = vst.msk [vmem:[#allocation4] sm:$0x3] %vm258, %v256
    %v260 = vpack.c.bf16 %v253, %v253
    %v261 = vld [vmem:[%s8] sm:$0xf]
    %v262 = vld [vmem:[%s8 + $0x4] sm:$0xf]
    %v263 = vld [vmem:[%s9] sm:$0x1]
    %v265 = vlaneseq
    %v266 = vshrl.u32 %v265, 7
    %v267 = vsub.s32 0, %v266
    %v268 = vrot.slane %v263, %v267
    %271 = vrot.lane.b32.xlu0 %v260, 112
    %v272 = vpop.permute.xlu0 %271
    %v275 = vunpack.c.l.b16 %v261
    %v276 = vunpack.c.l.b16 %v262
    %v277 = vpack.c.b16 %v276, %v275
    %v280 = vsel %vm114, %v272, 0
    %282 = vmatprep.subr.bf16.mxu0 0
    %283 = vmatpush1.bf16.msra.mxu0 %v277
    %284 = vmatprep.subr.bf16.mxu0 0
    %285 = vmatpush1.bf16.msra.mxu0 0
    %286 = vmatprep.subr.bf16.mxu0 0
    %287 = vmatpush1.bf16.msra.mxu0 0
    %288 = vmatprep.subr.bf16.mxu0 0
    %289 = vmatpush1.bf16.msra.mxu0 0
    %290 = vmatprep.subr.bf16.mxu0 0
    %291 = vmatpush1.bf16.msra.mxu0 0
    %292 = vmatprep.subr.bf16.mxu0 0
    %293 = vmatpush1.bf16.msra.mxu0 0
    %294 = vmatprep.subr.bf16.mxu0 0
    %295 = vmatpush1.bf16.msra.mxu0 0
    %296 = vmatprep.subr.bf16.mxu0 0
    %297 = vmatpush1.bf16.msra.mxu0 0
    %298 = vmatprep.subr.bf16.mxu0 0
    %299 = vmatpush1.bf16.msra.mxu0 0
    %300 = vmatprep.subr.bf16.mxu0 0
    %301 = vmatpush1.bf16.msra.mxu0 0
    %302 = vmatprep.subr.bf16.mxu0 0
    %303 = vmatpush1.bf16.msra.mxu0 0
    %304 = vmatprep.subr.bf16.mxu0 0
    %305 = vmatpush1.bf16.msra.mxu0 0
    %306 = vmatprep.subr.bf16.mxu0 0
    %307 = vmatpush1.bf16.msra.mxu0 0
    %308 = vmatprep.subr.bf16.mxu0 0
    %309 = vmatpush1.bf16.msra.mxu0 0
    %310 = vmatprep.subr.bf16.mxu0 0
    %311 = vmatpush1.bf16.msra.mxu0 0
    %312 = vmatprep.subr.bf16.mxu0 0
    %313 = vmatpush1.bf16.msra.mxu0 0
    %314 = vmatprep.mubr.bf16.mxu0 0
    %315 = vmatmul.mubr.bf16.gmra.mrb[0].mxu0 %v280
    %v316 = vpop.f32.mrb[0].mxu0
    %v317 = vadd.f32 %v268, %v316
    %v318 = vpop.f32.mrb[0].mxu0
    %v319 = vpop.f32.mrb[0].mxu0
    %v320 = vpop.f32.mrb[0].mxu0
    %321 = vdwg.mxu0
    %vm322 = vcmask 254976
    %323 = vst.msk [vmem:[#allocation2] sm:$0x3] %vm322, %v317
    // Predicated region
    $region42: #{decoder_forward.1} parent=1 // pred_check
      _
    $region43: #{decoder_forward.1} parent=1 // pred_check_branch
      %325 = sbr.rel (0) target = $region45
    $region44: #{decoder_forward.1} parent=1 // pred_region
      %s327 = ssub.s32 32, 32
      %328 = vsyncadd [#allocation3], %s327
      %s330 = sshll.u32 [#allocation2], 4
      %s331 = int_to_ptr.vmem [resolvable:$true] %s330
      %333 = dma.vmem_to_hbm [thread:$0]  %s331, 32, %s10, [#allocation3]
    $region45: #{decoder_forward.1} parent=1 // pred_fallthru
      _
    // Predicated region
    $region46: #{decoder_forward.1} parent=1 // pred_check
      _
    $region47: #{decoder_forward.1} parent=1 // pred_check_branch
      %335 = sbr.rel (0) target = $region49
    $region48: #{decoder_forward.1} parent=1 // pred_region
      %s337 = ssub.s32 32, 32
      %338 = vsyncadd [#allocation5], %s337
      %s340 = sshll.u32 [#allocation4], 4
      %s341 = int_to_ptr.vmem [resolvable:$true] %s340
      %343 = dma.vmem_to_hbm [thread:$0]  %s341, 32, %s11, [#allocation5]
    $region49: #{decoder_forward.1} parent=1 // pred_fallthru
      _
    // Predicated region
    $region50: #{decoder_forward.1} parent=1 // pred_check
      _
    $region51: #{decoder_forward.1} parent=1 // pred_check_branch
      %345 = sbr.rel (0) target = $region53
    $region52: #{decoder_forward.1} parent=1 // pred_region
      %346 = dma.done [#allocation3], 32
    $region53: #{decoder_forward.1} parent=1 // pred_fallthru
      _
    // Predicated region
    $region54: #{decoder_forward.1} parent=1 // pred_check
      _
    $region55: #{decoder_forward.1} parent=1 // pred_check_branch
      %348 = sbr.rel (0) target = $region57
    $region56: #{decoder_forward.1} parent=1 // pred_region
      %349 = dma.done [#allocation5], 32
    $region57: #{decoder_forward.1} parent=1 // pred_fallthru
      _
    %350 = vsyncpa [#allocation3], 1
    %351 = vsyncpa [#allocation5], 1

</llo_original>
